<compile_context>
chip_gen: v6e
topology: v6e:2x2x1
jax: 0.10.0
libtpu: 0.0.40
codegen_flags: <defaults>
</compile_context>

<pallas_src>
import jax
import jax.numpy as jnp
from jax import lax
from jax.experimental import pallas as pl
from jax.experimental.pallas import tpu as pltpu


def encoder_forward(x_btf, w_ih, w_hh, b_ih, b_hh):
    """x_btf: (B, T, F) float32, batch_first like the PyTorch module.

    w_ih: (4H, F), w_hh: (4H, H), b_ih/b_hh: (4H,)  — PyTorch LSTM parameter shapes.
    Returns hidden_n: (1, B, H).
    """
    B, T, F = x_btf.shape
    H4 = w_ih.shape[0]
    H = H4 // 4

    # ---- Layout / dtype glue (plain JAX) -----------------------------------
    # time-major and flattened to (T*B, F) so the input projection is ONE matmul;
    # weights pre-transposed to (F, 4H) / (H, 4H); MXU operands in bf16.
    x_flat = jnp.transpose(x_btf, (1, 0, 2)).reshape(T * B, F).astype(jnp.bfloat16)
    wih_t = jnp.transpose(w_ih, (1, 0)).astype(jnp.bfloat16)      # (F, 4H)
    whh_t = jnp.transpose(w_hh, (1, 0)).astype(jnp.bfloat16)      # (H, 4H)
    bias = (b_ih + b_hh).reshape(1, 4 * H).astype(jnp.float32)    # (1, 4H)

    def kernel(x_ref, wih_ref, whh_ref, b_ref, h_out_ref):
        # Hoisted input projection for ALL time steps, bias folded in once.
        # bf16 operands, f32 accumulation on the MXU.
        gates_all = (
            jnp.dot(x_ref[...], wih_ref[...], preferred_element_type=jnp.float32)
            + b_ref[...]
        )  # (T*B, 4H) f32

        # (1) Relayout ONCE to (T, B, 4H): per-step fetch becomes a leading-axis
        # index (different vreg offset, zero shuffle) instead of a per-step
        # sublane extraction inside the serialized recurrence.
        gates_all = gates_all.reshape(T, B, 4 * H)

        whh = whh_ref[...]  # (H, 4H) bf16 — stays resident across the unrolled loop

        h = jnp.zeros((B, H), jnp.float32)
        c = jnp.zeros((B, H), jnp.float32)

        # Fully unrolled recurrence (T static, small). Only h @ W_hh^T is on the
        # serialized critical path; gate math stays in f32 (VPU/EUP f32 path is
        # the right choice on all of v5e/v6e/v7x at these widths).
        for t in range(T):
            g = gates_all[t] + jnp.dot(
                h.astype(jnp.bfloat16), whh, preferred_element_type=jnp.float32
            )  # (B, 4H) f32, PyTorch gate order [i, f, g, o]

            # (2) Two EUP launches for the gate activations instead of four:
            # one full-width sigmoid (i, f, o lanes used; g lanes discarded)
            # and one tanh on the g slice.
            sg = jax.nn.sigmoid(g)                       # (B, 4H)
            gt = jnp.tanh(g[:, 2 * H:3 * H])             # (B, H)

            i_g = sg[:, 0 * H:1 * H]
            f_g = sg[:, 1 * H:2 * H]
            o_g = sg[:, 3 * H:4 * H]

            c = f_g * c + i_g * gt
            h = o_g * jnp.tanh(c)

        h_out_ref[...] = h

    h_n = pl.pallas_call(
        kernel,
        out_shape=jax.ShapeDtypeStruct((B, H), jnp.float32),
        in_specs=[
            pl.BlockSpec(memory_space=pltpu.MemorySpace.VMEM),  # x (T*B, F) bf16
            pl.BlockSpec(memory_space=pltpu.MemorySpace.VMEM),  # W_ih^T (F, 4H) bf16
            pl.BlockSpec(memory_space=pltpu.MemorySpace.VMEM),  # W_hh^T (H, 4H) bf16
            pl.BlockSpec(memory_space=pltpu.MemorySpace.VMEM),  # bias (1, 4H) f32
        ],
        out_specs=pl.BlockSpec(memory_space=pltpu.MemorySpace.VMEM),
    )(x_flat, wih_t, whh_t, bias)

    # hidden_n has shape (num_layers=1, B, H)
    return h_n[None, :, :]


def encoder_forward_ref_f32(x_btf, w_ih, w_hh, b_ih, b_hh):
    """Pure-JAX f32 reference (lax.scan) matching torch.nn.LSTM semantics."""
    B, T, F = x_btf.shape
    H = w_hh.shape[1]
    x_tbf = jnp.transpose(x_btf, (1, 0, 2))

    def step(carry, x_t):
        h, c = carry
        gates = x_t @ w_ih.T + b_ih + h @ w_hh.T + b_hh
        i = jax.nn.sigmoid(gates[:, 0 * H:1 * H])
        f = jax.nn.sigmoid(gates[:, 1 * H:2 * H])
        g = jnp.tanh(gates[:, 2 * H:3 * H])
        o = jax.nn.sigmoid(gates[:, 3 * H:4 * H])
        c = f * c + i * g
        h = o * jnp.tanh(c)
        return (h, c), None

    h0 = jnp.zeros((B, H), jnp.float32)
    c0 = jnp.zeros((B, H), jnp.float32)
    (h_n, _), _ = lax.scan(step, (h0, c0), x_tbf)
    return h_n[None, :, :]


def encoder_forward_ref_bf16(x_btf, w_ih, w_hh, b_ih, b_hh):
    """Reference mirroring the kernel's precision (bf16 matmuls, f32 gate math)."""
    B, T, F = x_btf.shape
    H = w_hh.shape[1]
    x_flat = jnp.transpose(x_btf, (1, 0, 2)).reshape(T * B, F).astype(jnp.bfloat16)
    wih_t = w_ih.T.astype(jnp.bfloat16)
    whh_t = w_hh.T.astype(jnp.bfloat16)
    bias = (b_ih + b_hh).astype(jnp.float32)

    gates_in = jnp.dot(x_flat, wih_t, preferred_element_type=jnp.float32) + bias
    gates_in = gates_in.reshape(T, B, 4 * H)

    def step(carry, g_in):
        h, c = carry
        g = g_in + jnp.dot(h.astype(jnp.bfloat16), whh_t,
                           preferred_element_type=jnp.float32)
        i = jax.nn.sigmoid(g[:, 0 * H:1 * H])
        f = jax.nn.sigmoid(g[:, 1 * H:2 * H])
        gg = jnp.tanh(g[:, 2 * H:3 * H])
        o = jax.nn.sigmoid(g[:, 3 * H:4 * H])
        c = f * c + i * gg
        h = o * jnp.tanh(c)
        return (h, c), None

    h0 = jnp.zeros((B, H), jnp.float32)
    c0 = jnp.zeros((B, H), jnp.float32)
    (h_n, _), _ = lax.scan(step, (h0, c0), gates_in)
    return h_n[None, :, :]


if __name__ == "__main__":
    # Small shapes consistent with the module: batch=2, seq=8, features=16, hidden=32
    # (If the caller can batch, stacking sequences so B is a multiple of 8 gives
    #  ~free throughput — per-step latency is nearly flat up to a full MXU tile.)
    B, T, F, H = 2, 8, 16, 32

    key = jax.random.PRNGKey(0)
    kx, k1, k2, k3, k4 = jax.random.split(key, 5)

    # Deterministic PyTorch-style init: U(-1/sqrt(H), 1/sqrt(H))
    bound = 1.0 / (H ** 0.5)
    x = jax.random.normal(kx, (B, T, F), dtype=jnp.float32)
    w_ih = jax.random.uniform(k1, (4 * H, F), jnp.float32, -bound, bound)
    w_hh = jax.random.uniform(k2, (4 * H, H), jnp.float32, -bound, bound)
    b_ih = jax.random.uniform(k3, (4 * H,), jnp.float32, -bound, bound)
    b_hh = jax.random.uniform(k4, (4 * H,), jnp.float32, -bound, bound)

    hidden_n = jax.jit(encoder_forward)(x, w_ih, w_hh, b_ih, b_hh)
    hidden_n = jax.block_until_ready(hidden_n)

    assert hidden_n.shape == (1, B, H), hidden_n.shape

    # Tight check against the precision-matched reference (same bf16 matmul /
    # f32 accumulate recipe as the kernel).
    ref_bf16 = encoder_forward_ref_bf16(x, w_ih, w_hh, b_ih, b_hh)
    assert jnp.allclose(hidden_n, ref_bf16, atol=1e-3, rtol=1e-3), (
        float(jnp.max(jnp.abs(hidden_n - ref_bf16)))
    )

    # Loose check against full-f32 torch-semantics reference (bounds bf16 drift).
    ref_f32 = encoder_forward_ref_f32(x, w_ih, w_hh, b_ih, b_hh)
    assert jnp.allclose(hidden_n, ref_f32, atol=5e-2, rtol=5e-2), (
        float(jnp.max(jnp.abs(hidden_n - ref_f32)))
    )

    print("KERNEL_OK")
</pallas_src>

<mosaic_0001>
module attributes {stable_mosaic.version = 11 : i64} {
  func.func @kernel(%arg0: memref<16x16xbf16, #tpu.memory_space<vmem>>, %arg1: memref<16x128xbf16, #tpu.memory_space<vmem>>, %arg2: memref<32x128xbf16, #tpu.memory_space<vmem>>, %arg3: memref<1x128xf32, #tpu.memory_space<vmem>>, %arg4: memref<2x32xf32, #tpu.memory_space<vmem>>) attributes {dimension_semantics = [], scalar_prefetch = 0 : i64, scratch_operands = 0 : i64, tpu.core_type = #tpu.core_type<tc>} {
    %c0 = arith.constant 0 : index
    %c0_0 = arith.constant 0 : index
    %0 = vector.load %arg0[%c0, %c0_0] : memref<16x16xbf16, #tpu.memory_space<vmem>>, vector<16x16xbf16>
    %c0_1 = arith.constant 0 : index
    %c0_2 = arith.constant 0 : index
    %1 = vector.load %arg1[%c0_1, %c0_2] : memref<16x128xbf16, #tpu.memory_space<vmem>>, vector<16x128xbf16>
    %cst = arith.constant dense<0.000000e+00> : vector<16x128xf32>
    %2 = tpu.matmul %0, %1, %cst {dimension_numbers = #tpu.dot_dimension_numbers<[1], [0], [0], [1], [0, 0, 1, 1], [], []>} : vector<16x16xbf16>, vector<16x128xbf16>, vector<16x128xf32> -> vector<16x128xf32>
    %c0_3 = arith.constant 0 : index
    %c0_4 = arith.constant 0 : index
    %3 = vector.load %arg3[%c0_3, %c0_4] : memref<1x128xf32, #tpu.memory_space<vmem>>, vector<1x128xf32>
    %4 = vector.broadcast %3 : vector<1x128xf32> to vector<16x128xf32>
    %5 = arith.addf %2, %4 : vector<16x128xf32>
    %6 = vector.shape_cast %5 : vector<16x128xf32> to vector<8x2x128xf32>
    %c0_5 = arith.constant 0 : index
    %c0_6 = arith.constant 0 : index
    %7 = vector.load %arg2[%c0_5, %c0_6] : memref<32x128xbf16, #tpu.memory_space<vmem>>, vector<32x128xbf16>
    %cst_7 = arith.constant 0.000000e+00 : f32
    %8 = vector.broadcast %cst_7 : f32 to vector<2x32xf32>
    %cst_8 = arith.constant 0.000000e+00 : f32
    %9 = vector.broadcast %cst_8 : f32 to vector<2x32xf32>
    %10 = vector.extract_strided_slice %6 {offsets = [0, 0, 0], sizes = [1, 2, 128], strides = [1, 1, 1]} : vector<8x2x128xf32> to vector<1x2x128xf32>
    %11 = vector.shape_cast %10 : vector<1x2x128xf32> to vector<2x128xf32>
    %12 = arith.truncf %8 : vector<2x32xf32> to vector<2x32xbf16>
    %cst_9 = arith.constant dense<0.000000e+00> : vector<2x128xf32>
    %13 = tpu.matmul %12, %7, %cst_9 {dimension_numbers = #tpu.dot_dimension_numbers<[1], [0], [0], [1], [0, 0, 1, 1], [], []>} : vector<2x32xbf16>, vector<32x128xbf16>, vector<2x128xf32> -> vector<2x128xf32>
    %14 = arith.addf %11, %13 : vector<2x128xf32>
    %15 = arith.negf %14 : vector<2x128xf32>
    %16 = math.exp %15 : vector<2x128xf32>
    %cst_10 = arith.constant 1.000000e+00 : f32
    %17 = vector.broadcast %cst_10 : f32 to vector<2x128xf32>
    %18 = arith.addf %17, %16 : vector<2x128xf32>
    %19 = arith.divf %17, %18 : vector<2x128xf32>
    %20 = vector.extract_strided_slice %14 {offsets = [0, 64], sizes = [2, 32], strides = [1, 1]} : vector<2x128xf32> to vector<2x32xf32>
    %21 = math.tanh %20 : vector<2x32xf32>
    %22 = vector.extract_strided_slice %19 {offsets = [0, 0], sizes = [2, 32], strides = [1, 1]} : vector<2x128xf32> to vector<2x32xf32>
    %23 = vector.extract_strided_slice %19 {offsets = [0, 32], sizes = [2, 32], strides = [1, 1]} : vector<2x128xf32> to vector<2x32xf32>
    %24 = vector.extract_strided_slice %19 {offsets = [0, 96], sizes = [2, 32], strides = [1, 1]} : vector<2x128xf32> to vector<2x32xf32>
    %25 = arith.mulf %23, %9 : vector<2x32xf32>
    %26 = arith.mulf %22, %21 : vector<2x32xf32>
    %27 = arith.addf %25, %26 : vector<2x32xf32>
    %28 = math.tanh %27 : vector<2x32xf32>
    %29 = arith.mulf %24, %28 : vector<2x32xf32>
    %30 = vector.extract_strided_slice %6 {offsets = [1, 0, 0], sizes = [1, 2, 128], strides = [1, 1, 1]} : vector<8x2x128xf32> to vector<1x2x128xf32>
    %31 = vector.shape_cast %30 : vector<1x2x128xf32> to vector<2x128xf32>
    %32 = arith.truncf %29 : vector<2x32xf32> to vector<2x32xbf16>
    %cst_11 = arith.constant dense<0.000000e+00> : vector<2x128xf32>
    %33 = tpu.matmul %32, %7, %cst_11 {dimension_numbers = #tpu.dot_dimension_numbers<[1], [0], [0], [1], [0, 0, 1, 1], [], []>} : vector<2x32xbf16>, vector<32x128xbf16>, vector<2x128xf32> -> vector<2x128xf32>
    %34 = arith.addf %31, %33 : vector<2x128xf32>
    %35 = arith.negf %34 : vector<2x128xf32>
    %36 = math.exp %35 : vector<2x128xf32>
    %cst_12 = arith.constant 1.000000e+00 : f32
    %37 = vector.broadcast %cst_12 : f32 to vector<2x128xf32>
    %38 = arith.addf %37, %36 : vector<2x128xf32>
    %39 = arith.divf %37, %38 : vector<2x128xf32>
    %40 = vector.extract_strided_slice %34 {offsets = [0, 64], sizes = [2, 32], strides = [1, 1]} : vector<2x128xf32> to vector<2x32xf32>
    %41 = math.tanh %40 : vector<2x32xf32>
    %42 = vector.extract_strided_slice %39 {offsets = [0, 0], sizes = [2, 32], strides = [1, 1]} : vector<2x128xf32> to vector<2x32xf32>
    %43 = vector.extract_strided_slice %39 {offsets = [0, 32], sizes = [2, 32], strides = [1, 1]} : vector<2x128xf32> to vector<2x32xf32>
    %44 = vector.extract_strided_slice %39 {offsets = [0, 96], sizes = [2, 32], strides = [1, 1]} : vector<2x128xf32> to vector<2x32xf32>
    %45 = arith.mulf %43, %27 : vector<2x32xf32>
    %46 = arith.mulf %42, %41 : vector<2x32xf32>
    %47 = arith.addf %45, %46 : vector<2x32xf32>
    %48 = math.tanh %47 : vector<2x32xf32>
    %49 = arith.mulf %44, %48 : vector<2x32xf32>
    %50 = vector.extract_strided_slice %6 {offsets = [2, 0, 0], sizes = [1, 2, 128], strides = [1, 1, 1]} : vector<8x2x128xf32> to vector<1x2x128xf32>
    %51 = vector.shape_cast %50 : vector<1x2x128xf32> to vector<2x128xf32>
    %52 = arith.truncf %49 : vector<2x32xf32> to vector<2x32xbf16>
    %cst_13 = arith.constant dense<0.000000e+00> : vector<2x128xf32>
    %53 = tpu.matmul %52, %7, %cst_13 {dimension_numbers = #tpu.dot_dimension_numbers<[1], [0], [0], [1], [0, 0, 1, 1], [], []>} : vector<2x32xbf16>, vector<32x128xbf16>, vector<2x128xf32> -> vector<2x128xf32>
    %54 = arith.addf %51, %53 : vector<2x128xf32>
    %55 = arith.negf %54 : vector<2x128xf32>
    %56 = math.exp %55 : vector<2x128xf32>
    %cst_14 = arith.constant 1.000000e+00 : f32
    %57 = vector.broadcast %cst_14 : f32 to vector<2x128xf32>
    %58 = arith.addf %57, %56 : vector<2x128xf32>
    %59 = arith.divf %57, %58 : vector<2x128xf32>
    %60 = vector.extract_strided_slice %54 {offsets = [0, 64], sizes = [2, 32], strides = [1, 1]} : vector<2x128xf32> to vector<2x32xf32>
    %61 = math.tanh %60 : vector<2x32xf32>
    %62 = vector.extract_strided_slice %59 {offsets = [0, 0], sizes = [2, 32], strides = [1, 1]} : vector<2x128xf32> to vector<2x32xf32>
    %63 = vector.extract_strided_slice %59 {offsets = [0, 32], sizes = [2, 32], strides = [1, 1]} : vector<2x128xf32> to vector<2x32xf32>
    %64 = vector.extract_strided_slice %59 {offsets = [0, 96], sizes = [2, 32], strides = [1, 1]} : vector<2x128xf32> to vector<2x32xf32>
    %65 = arith.mulf %63, %47 : vector<2x32xf32>
    %66 = arith.mulf %62, %61 : vector<2x32xf32>
    %67 = arith.addf %65, %66 : vector<2x32xf32>
    %68 = math.tanh %67 : vector<2x32xf32>
    %69 = arith.mulf %64, %68 : vector<2x32xf32>
    %70 = vector.extract_strided_slice %6 {offsets = [3, 0, 0], sizes = [1, 2, 128], strides = [1, 1, 1]} : vector<8x2x128xf32> to vector<1x2x128xf32>
    %71 = vector.shape_cast %70 : vector<1x2x128xf32> to vector<2x128xf32>
    %72 = arith.truncf %69 : vector<2x32xf32> to vector<2x32xbf16>
    %cst_15 = arith.constant dense<0.000000e+00> : vector<2x128xf32>
    %73 = tpu.matmul %72, %7, %cst_15 {dimension_numbers = #tpu.dot_dimension_numbers<[1], [0], [0], [1], [0, 0, 1, 1], [], []>} : vector<2x32xbf16>, vector<32x128xbf16>, vector<2x128xf32> -> vector<2x128xf32>
    %74 = arith.addf %71, %73 : vector<2x128xf32>
    %75 = arith.negf %74 : vector<2x128xf32>
    %76 = math.exp %75 : vector<2x128xf32>
    %cst_16 = arith.constant 1.000000e+00 : f32
    %77 = vector.broadcast %cst_16 : f32 to vector<2x128xf32>
    %78 = arith.addf %77, %76 : vector<2x128xf32>
    %79 = arith.divf %77, %78 : vector<2x128xf32>
    %80 = vector.extract_strided_slice %74 {offsets = [0, 64], sizes = [2, 32], strides = [1, 1]} : vector<2x128xf32> to vector<2x32xf32>
    %81 = math.tanh %80 : vector<2x32xf32>
    %82 = vector.extract_strided_slice %79 {offsets = [0, 0], sizes = [2, 32], strides = [1, 1]} : vector<2x128xf32> to vector<2x32xf32>
    %83 = vector.extract_strided_slice %79 {offsets = [0, 32], sizes = [2, 32], strides = [1, 1]} : vector<2x128xf32> to vector<2x32xf32>
    %84 = vector.extract_strided_slice %79 {offsets = [0, 96], sizes = [2, 32], strides = [1, 1]} : vector<2x128xf32> to vector<2x32xf32>
    %85 = arith.mulf %83, %67 : vector<2x32xf32>
    %86 = arith.mulf %82, %81 : vector<2x32xf32>
    %87 = arith.addf %85, %86 : vector<2x32xf32>
    %88 = math.tanh %87 : vector<2x32xf32>
    %89 = arith.mulf %84, %88 : vector<2x32xf32>
    %90 = vector.extract_strided_slice %6 {offsets = [4, 0, 0], sizes = [1, 2, 128], strides = [1, 1, 1]} : vector<8x2x128xf32> to vector<1x2x128xf32>
    %91 = vector.shape_cast %90 : vector<1x2x128xf32> to vector<2x128xf32>
    %92 = arith.truncf %89 : vector<2x32xf32> to vector<2x32xbf16>
    %cst_17 = arith.constant dense<0.000000e+00> : vector<2x128xf32>
    %93 = tpu.matmul %92, %7, %cst_17 {dimension_numbers = #tpu.dot_dimension_numbers<[1], [0], [0], [1], [0, 0, 1, 1], [], []>} : vector<2x32xbf16>, vector<32x128xbf16>, vector<2x128xf32> -> vector<2x128xf32>
    %94 = arith.addf %91, %93 : vector<2x128xf32>
    %95 = arith.negf %94 : vector<2x128xf32>
    %96 = math.exp %95 : vector<2x128xf32>
    %cst_18 = arith.constant 1.000000e+00 : f32
    %97 = vector.broadcast %cst_18 : f32 to vector<2x128xf32>
    %98 = arith.addf %97, %96 : vector<2x128xf32>
    %99 = arith.divf %97, %98 : vector<2x128xf32>
    %100 = vector.extract_strided_slice %94 {offsets = [0, 64], sizes = [2, 32], strides = [1, 1]} : vector<2x128xf32> to vector<2x32xf32>
    %101 = math.tanh %100 : vector<2x32xf32>
    %102 = vector.extract_strided_slice %99 {offsets = [0, 0], sizes = [2, 32], strides = [1, 1]} : vector<2x128xf32> to vector<2x32xf32>
    %103 = vector.extract_strided_slice %99 {offsets = [0, 32], sizes = [2, 32], strides = [1, 1]} : vector<2x128xf32> to vector<2x32xf32>
    %104 = vector.extract_strided_slice %99 {offsets = [0, 96], sizes = [2, 32], strides = [1, 1]} : vector<2x128xf32> to vector<2x32xf32>
    %105 = arith.mulf %103, %87 : vector<2x32xf32>
    %106 = arith.mulf %102, %101 : vector<2x32xf32>
    %107 = arith.addf %105, %106 : vector<2x32xf32>
    %108 = math.tanh %107 : vector<2x32xf32>
    %109 = arith.mulf %104, %108 : vector<2x32xf32>
    %110 = vector.extract_strided_slice %6 {offsets = [5, 0, 0], sizes = [1, 2, 128], strides = [1, 1, 1]} : vector<8x2x128xf32> to vector<1x2x128xf32>
    %111 = vector.shape_cast %110 : vector<1x2x128xf32> to vector<2x128xf32>
    %112 = arith.truncf %109 : vector<2x32xf32> to vector<2x32xbf16>
    %cst_19 = arith.constant dense<0.000000e+00> : vector<2x128xf32>
    %113 = tpu.matmul %112, %7, %cst_19 {dimension_numbers = #tpu.dot_dimension_numbers<[1], [0], [0], [1], [0, 0, 1, 1], [], []>} : vector<2x32xbf16>, vector<32x128xbf16>, vector<2x128xf32> -> vector<2x128xf32>
    %114 = arith.addf %111, %113 : vector<2x128xf32>
    %115 = arith.negf %114 : vector<2x128xf32>
    %116 = math.exp %115 : vector<2x128xf32>
    %cst_20 = arith.constant 1.000000e+00 : f32
    %117 = vector.broadcast %cst_20 : f32 to vector<2x128xf32>
    %118 = arith.addf %117, %116 : vector<2x128xf32>
    %119 = arith.divf %117, %118 : vector<2x128xf32>
    %120 = vector.extract_strided_slice %114 {offsets = [0, 64], sizes = [2, 32], strides = [1, 1]} : vector<2x128xf32> to vector<2x32xf32>
    %121 = math.tanh %120 : vector<2x32xf32>
    %122 = vector.extract_strided_slice %119 {offsets = [0, 0], sizes = [2, 32], strides = [1, 1]} : vector<2x128xf32> to vector<2x32xf32>
    %123 = vector.extract_strided_slice %119 {offsets = [0, 32], sizes = [2, 32], strides = [1, 1]} : vector<2x128xf32> to vector<2x32xf32>
    %124 = vector.extract_strided_slice %119 {offsets = [0, 96], sizes = [2, 32], strides = [1, 1]} : vector<2x128xf32> to vector<2x32xf32>
    %125 = arith.mulf %123, %107 : vector<2x32xf32>
    %126 = arith.mulf %122, %121 : vector<2x32xf32>
    %127 = arith.addf %125, %126 : vector<2x32xf32>
    %128 = math.tanh %127 : vector<2x32xf32>
    %129 = arith.mulf %124, %128 : vector<2x32xf32>
    %130 = vector.extract_strided_slice %6 {offsets = [6, 0, 0], sizes = [1, 2, 128], strides = [1, 1, 1]} : vector<8x2x128xf32> to vector<1x2x128xf32>
    %131 = vector.shape_cast %130 : vector<1x2x128xf32> to vector<2x128xf32>
    %132 = arith.truncf %129 : vector<2x32xf32> to vector<2x32xbf16>
    %cst_21 = arith.constant dense<0.000000e+00> : vector<2x128xf32>
    %133 = tpu.matmul %132, %7, %cst_21 {dimension_numbers = #tpu.dot_dimension_numbers<[1], [0], [0], [1], [0, 0, 1, 1], [], []>} : vector<2x32xbf16>, vector<32x128xbf16>, vector<2x128xf32> -> vector<2x128xf32>
    %134 = arith.addf %131, %133 : vector<2x128xf32>
    %135 = arith.negf %134 : vector<2x128xf32>
    %136 = math.exp %135 : vector<2x128xf32>
    %cst_22 = arith.constant 1.000000e+00 : f32
    %137 = vector.broadcast %cst_22 : f32 to vector<2x128xf32>
    %138 = arith.addf %137, %136 : vector<2x128xf32>
    %139 = arith.divf %137, %138 : vector<2x128xf32>
    %140 = vector.extract_strided_slice %134 {offsets = [0, 64], sizes = [2, 32], strides = [1, 1]} : vector<2x128xf32> to vector<2x32xf32>
    %141 = math.tanh %140 : vector<2x32xf32>
    %142 = vector.extract_strided_slice %139 {offsets = [0, 0], sizes = [2, 32], strides = [1, 1]} : vector<2x128xf32> to vector<2x32xf32>
    %143 = vector.extract_strided_slice %139 {offsets = [0, 32], sizes = [2, 32], strides = [1, 1]} : vector<2x128xf32> to vector<2x32xf32>
    %144 = vector.extract_strided_slice %139 {offsets = [0, 96], sizes = [2, 32], strides = [1, 1]} : vector<2x128xf32> to vector<2x32xf32>
    %145 = arith.mulf %143, %127 : vector<2x32xf32>
    %146 = arith.mulf %142, %141 : vector<2x32xf32>
    %147 = arith.addf %145, %146 : vector<2x32xf32>
    %148 = math.tanh %147 : vector<2x32xf32>
    %149 = arith.mulf %144, %148 : vector<2x32xf32>
    %150 = vector.extract_strided_slice %6 {offsets = [7, 0, 0], sizes = [1, 2, 128], strides = [1, 1, 1]} : vector<8x2x128xf32> to vector<1x2x128xf32>
    %151 = vector.shape_cast %150 : vector<1x2x128xf32> to vector<2x128xf32>
    %152 = arith.truncf %149 : vector<2x32xf32> to vector<2x32xbf16>
    %cst_23 = arith.constant dense<0.000000e+00> : vector<2x128xf32>
    %153 = tpu.matmul %152, %7, %cst_23 {dimension_numbers = #tpu.dot_dimension_numbers<[1], [0], [0], [1], [0, 0, 1, 1], [], []>} : vector<2x32xbf16>, vector<32x128xbf16>, vector<2x128xf32> -> vector<2x128xf32>
    %154 = arith.addf %151, %153 : vector<2x128xf32>
    %155 = arith.negf %154 : vector<2x128xf32>
    %156 = math.exp %155 : vector<2x128xf32>
    %cst_24 = arith.constant 1.000000e+00 : f32
    %157 = vector.broadcast %cst_24 : f32 to vector<2x128xf32>
    %158 = arith.addf %157, %156 : vector<2x128xf32>
    %159 = arith.divf %157, %158 : vector<2x128xf32>
    %160 = vector.extract_strided_slice %154 {offsets = [0, 64], sizes = [2, 32], strides = [1, 1]} : vector<2x128xf32> to vector<2x32xf32>
    %161 = math.tanh %160 : vector<2x32xf32>
    %162 = vector.extract_strided_slice %159 {offsets = [0, 0], sizes = [2, 32], strides = [1, 1]} : vector<2x128xf32> to vector<2x32xf32>
    %163 = vector.extract_strided_slice %159 {offsets = [0, 32], sizes = [2, 32], strides = [1, 1]} : vector<2x128xf32> to vector<2x32xf32>
    %164 = vector.extract_strided_slice %159 {offsets = [0, 96], sizes = [2, 32], strides = [1, 1]} : vector<2x128xf32> to vector<2x32xf32>
    %165 = arith.mulf %163, %147 : vector<2x32xf32>
    %166 = arith.mulf %162, %161 : vector<2x32xf32>
    %167 = arith.addf %165, %166 : vector<2x32xf32>
    %168 = math.tanh %167 : vector<2x32xf32>
    %169 = arith.mulf %164, %168 : vector<2x32xf32>
    %c0_25 = arith.constant 0 : index
    %c0_26 = arith.constant 0 : index
    %170 = vector.load %arg4[%c0_25, %c0_26] : memref<2x32xf32, #tpu.memory_space<vmem>>, vector<2x32xf32>
    tpu.vector_store %arg4[%c0_25, %c0_26], %169 {strides = array<i32>} : memref<2x32xf32, #tpu.memory_space<vmem>>, vector<2x32xf32>,
    return
  }
}

</mosaic_0001>

<llo_original>
// kernel: encoder_forward.1
$region0: #{encoder_forward.1}
  #allocation0 [shape = 'u32[]', space=smem, size = 0x4, offset = 0x4, fixed_abs, tag = 'smem constant byte address 0x4 - core index']
  #allocation1 [shape = 'u32[144,128]{1,0:T(1,128)}', space=vmem, size = 0x12000, scoped, tag = 'internal scratch']
  %s0 = inlined_call_operand.vmem [shape: bf16[16,16], index: 0, kind: input, shape index: {}]
  %s1 = inlined_call_operand.vmem [shape: bf16[16,128], index: 1, kind: input, shape index: {}]
  %s2 = inlined_call_operand.vmem [shape: bf16[32,128], index: 2, kind: input, shape index: {}]
  %s3 = inlined_call_operand.vmem [shape: f32[1,128], index: 3, kind: input, shape index: {}]
  %s4 = inlined_call_operand.hbm [shape: f32[2,32], index: 4, kind: output, shape index: {}]
  %s5 = sld [smem:[#allocation0]]
  $region26: #{encoder_forward.1} parent=0
    _
  %s7 = ssub.s32 1, %s5
  %s8 = scalar_select 0, %s7, %s5
  $region1: #{encoder_forward.1} parent=0
    #allocation2 [shape = 'u8[1024]{0}', space=vmem, size = 0x400, scoped, tag = 'output window, operand 0, single buffered']
    #allocation3 [shape = 's32[1]{0}', space=sflag, size = 0x4, scoped, tag = 'scoped memory for encoder_forward.1']
    %9 = vsyncpa [#allocation3], 0
    // Predicated region
    $region2: #{encoder_forward.1} parent=1 // pred_check
      _
    $region3: #{encoder_forward.1} parent=1 // pred_check_branch
      %11 = sbr.rel (0) target = $region5
    $region4: #{encoder_forward.1} parent=1 // pred_region
      _
    $region5: #{encoder_forward.1} parent=1 // pred_fallthru
      _
    // Predicated region
    $region6: #{encoder_forward.1} parent=1 // pred_check
      _
    $region7: #{encoder_forward.1} parent=1 // pred_check_branch
      %13 = sbr.rel (0) target = $region9
    $region8: #{encoder_forward.1} parent=1 // pred_region
      _
    $region9: #{encoder_forward.1} parent=1 // pred_fallthru
      _
    // Predicated region
    $region10: #{encoder_forward.1} parent=1 // pred_check
      _
    $region11: #{encoder_forward.1} parent=1 // pred_check_branch
      %15 = sbr.rel (0) target = $region13
    $region12: #{encoder_forward.1} parent=1 // pred_region
      _
    $region13: #{encoder_forward.1} parent=1 // pred_fallthru
      _
    // Predicated region
    $region14: #{encoder_forward.1} parent=1 // pred_check
      _
    $region15: #{encoder_forward.1} parent=1 // pred_check_branch
      %17 = sbr.rel (0) target = $region17
    $region16: #{encoder_forward.1} parent=1 // pred_region
      _
    $region17: #{encoder_forward.1} parent=1 // pred_fallthru
      _
    %v19 = vld [vmem:[%s0] sm:$0xf]
    %v20 = vld [vmem:[%s0 + $0x4] sm:$0xf]
    %v21 = vld [vmem:[%s1] sm:$0xf]
    %v22 = vld [vmem:[%s1 + $0x4] sm:$0xf]
    %v23 = vld [vmem:[%s3] sm:$0x1]
    %v25 = vlaneseq
    %v26 = vshrl.u32 %v25, 7
    %v27 = vsub.s32 0, %v26
    %v28 = vrot.slane %v23, %v27
    %v32 = vunpack.c.l.b16 %v19
    %v33 = vunpack.c.l.b16 %v20
    %v34 = vpack.c.b16 %v33, %v32
    %v37 = vunpack.c.l.b16 %v21
    %v38 = vunpack.c.l.b16 %v22
    %v39 = vpack.c.b16 %v38, %v37
    %vm41 = vcmask 130048
    %v43 = vsel %vm41, %v34, 0
    %45 = vmatprep.subr.bf16.mxu0 0
    %46 = vmatpush1.bf16.msra.mxu0 0
    %47 = vmatprep.subr.bf16.mxu0 0
    %48 = vmatpush1.bf16.msra.mxu0 0
    %49 = vmatprep.subr.bf16.mxu0 0
    %50 = vmatpush1.bf16.msra.mxu0 0
    %51 = vmatprep.subr.bf16.mxu0 0
    %52 = vmatpush1.bf16.msra.mxu0 0
    %53 = vmatprep.subr.bf16.mxu0 0
    %54 = vmatpush1.bf16.msra.mxu0 0
    %55 = vmatprep.subr.bf16.mxu0 0
    %56 = vmatpush1.bf16.msra.mxu0 0
    %57 = vmatprep.subr.bf16.mxu0 0
    %58 = vmatpush1.bf16.msra.mxu0 0
    %59 = vmatprep.subr.bf16.mxu0 0
    %60 = vmatpush1.bf16.msra.mxu0 %v39
    %61 = vmatprep.subr.bf16.mxu0 0
    %62 = vmatpush2.bf16.msra.mxu0 0
    %63 = vmatprep.subr.bf16.mxu0 0
    %64 = vmatpush2.bf16.msra.mxu0 0
    %65 = vmatprep.subr.bf16.mxu0 0
    %66 = vmatpush2.bf16.msra.mxu0 0
    %67 = vmatprep.subr.bf16.mxu0 0
    %68 = vmatpush2.bf16.msra.mxu0 0
    %69 = vmatprep.subr.bf16.mxu0 0
    %70 = vmatpush2.bf16.msra.mxu0 0
    %71 = vmatprep.subr.bf16.mxu0 0
    %72 = vmatpush2.bf16.msra.mxu0 0
    %73 = vmatprep.subr.bf16.mxu0 0
    %74 = vmatpush2.bf16.msra.mxu0 0
    %75 = vmatprep.subr.bf16.mxu0 0
    %76 = vmatpush2.bf16.msra.mxu0 0
    %77 = vmatprep.mubr.bf16.mxu0 0
    %78 = vmatmul.mubr.bf16.gmra.mxu0 %v43
    %v79 = vpop.f32.mrf.mxu0
    %v80 = vadd.f32 %v28, %v79
    %v81 = vpop.f32.mrf.mxu0
    %v82 = vpop.f32.mrf.mxu0
    %v83 = vadd.f32 %v28, %v82
    %v84 = vpop.f32.mrf.mxu0
    %85 = vdwg.mxu0
    %v88 = vcombine.high %v80, %v80
    %v90 = vunpack.c.l.s4 1983009808
    %v91 = vunpack.c.0.s8 %v90
    %v92 = vlaneseq
    %v93 = vshrl.u32 %v92, 7
    %v94 = vsub.s32 %v91, %v93
    %v95 = vrot.slane %v80, %v94
    %v97 = vunpack.c.l.s4 1983009808
    %v98 = vunpack.c.0.s8 %v97
    %v99 = vlaneseq
    %v100 = vshrl.u32 %v99, 7
    %v101 = vsub.s32 %v98, %v100
    %v102 = vrot.slane %v88, %v101
    %v103 = vcombine.high %v95, %v95
    %v104 = vcombine.high %v102, %v102
    %v105 = vcombine.high %v83, %v83
    %v107 = vunpack.c.l.s4 1983009808
    %v108 = vunpack.c.0.s8 %v107
    %v109 = vlaneseq
    %v110 = vshrl.u32 %v109, 7
    %v111 = vsub.s32 %v108, %v110
    %v112 = vrot.slane %v83, %v111
    %v114 = vunpack.c.l.s4 1983009808
    %v115 = vunpack.c.0.s8 %v114
    %v116 = vlaneseq
    %v117 = vshrl.u32 %v116, 7
    %v118 = vsub.s32 %v115, %v117
    %v119 = vrot.slane %v105, %v118
    %v120 = vcombine.high %v112, %v112
    %v121 = vcombine.high %v119, %v119
    %v130 = vld [vmem:[%s2] sm:$0xf]
    %v131 = vld [vmem:[%s2 + $0x4] sm:$0xf]
    %v132 = vld [vmem:[%s2 + $0x8] sm:$0xf]
    %v133 = vld [vmem:[%s2 + $0xc] sm:$0xf]
    %v138 = vunpack.c.l.b16 %v130
    %v139 = vunpack.c.l.b16 %v131
    %v140 = vunpack.c.l.b16 %v132
    %v141 = vunpack.c.l.b16 %v133
    %v142 = vpack.c.b16 %v139, %v138
    %v143 = vpack.c.b16 %v141, %v140
    %vm146 = vcmask 261120
    %v148 = vsel %vm146, 0, 0
    %150 = vmatprep.subr.bf16.mxu0 0
    %151 = vmatpush1.bf16.msra.mxu0 0
    %152 = vmatprep.subr.bf16.mxu0 0
    %153 = vmatpush1.bf16.msra.mxu0 0
    %154 = vmatprep.subr.bf16.mxu0 0
    %155 = vmatpush1.bf16.msra.mxu0 0
    %156 = vmatprep.subr.bf16.mxu0 0
    %157 = vmatpush1.bf16.msra.mxu0 0
    %158 = vmatprep.subr.bf16.mxu0 0
    %159 = vmatpush1.bf16.msra.mxu0 0
    %160 = vmatprep.subr.bf16.mxu0 0
    %161 = vmatpush1.bf16.msra.mxu0 0
    %162 = vmatprep.subr.bf16.mxu0 0
    %163 = vmatpush1.bf16.msra.mxu0 %v143
    %164 = vmatprep.subr.bf16.mxu0 0
    %165 = vmatpush1.bf16.msra.mxu0 %v142
    %166 = vmatprep.subr.bf16.mxu0 0
    %167 = vmatpush2.bf16.msra.mxu0 0
    %168 = vmatprep.subr.bf16.mxu0 0
    %169 = vmatpush2.bf16.msra.mxu0 0
    %170 = vmatprep.subr.bf16.mxu0 0
    %171 = vmatpush2.bf16.msra.mxu0 0
    %172 = vmatprep.subr.bf16.mxu0 0
    %173 = vmatpush2.bf16.msra.mxu0 0
    %174 = vmatprep.subr.bf16.mxu0 0
    %175 = vmatpush2.bf16.msra.mxu0 0
    %176 = vmatprep.subr.bf16.mxu0 0
    %177 = vmatpush2.bf16.msra.mxu0 0
    %178 = vmatprep.subr.bf16.mxu0 0
    %179 = vmatpush2.bf16.msra.mxu0 0
    %180 = vmatprep.subr.bf16.mxu0 0
    %181 = vmatpush2.bf16.msra.mxu0 0
    %182 = vmatprep.mubr.bf16.mxu0 0
    %183 = vmatmul.mubr.bf16.gmra.mxu0 %v148
    %v184 = vpop.f32.mrf.mxu0
    %v185 = vadd.f32 0.0, %v184
    %v186 = vpop.f32.mrf.mxu0
    %v187 = vpop.f32.mrf.mxu0
    %v188 = vpop.f32.mrf.mxu0
    %189 = vdwg.mxu0
    %v190 = vadd.f32 %v95, %v185
    %v191 = vxor.u32 %v190, 2147483648
    %v192 = vmul.f32 %v191, 1.442695
    %v193 = vpow.pop %v192
    %v194 = vadd.f32 %v193, 1.0
    %v195 = vrcp.pop %v194
    %v196 = vmul.f32 1.0, %v195
    %v197 = vtanh.pop %v190
    %v198 = vmul.f32 %v196, 0.0
    %200 = vrot.lane.b32.xlu0 %v197, 64
    %v201 = vpop.permute.xlu0 %200
    %v203 = vmul.f32 %v196, %v201
    %205 = vrot.lane.b32.xlu0 %v203, 32
    %v206 = vpop.permute.xlu0 %205
    %v208 = vadd.f32 %v198, %v206
    %v209 = vtanh.pop %v208
    %211 = vrot.lane.b32.xlu0 %v209, 64
    %v212 = vpop.permute.xlu0 %211
    %v214 = vmul.f32 %v196, %v212
    %v215 = vpack.c.bf16 %v214, %v214
    %217 = vrot.lane.b32.xlu0 %v215, 32
    %v218 = vpop.permute.xlu0 %217
    %v220 = vsel %vm146, %v218, 0
    %222 = vmatprep.subr.bf16.mxu0 0
    %223 = vmatpush1.bf16.msra.mxu0 0
    %224 = vmatprep.subr.bf16.mxu0 0
    %225 = vmatpush1.bf16.msra.mxu0 0
    %226 = vmatprep.subr.bf16.mxu0 0
    %227 = vmatpush1.bf16.msra.mxu0 0
    %228 = vmatprep.subr.bf16.mxu0 0
    %229 = vmatpush1.bf16.msra.mxu0 0
    %230 = vmatprep.subr.bf16.mxu0 0
    %231 = vmatpush1.bf16.msra.mxu0 0
    %232 = vmatprep.subr.bf16.mxu0 0
    %233 = vmatpush1.bf16.msra.mxu0 0
    %234 = vmatprep.subr.bf16.mxu0 0
    %235 = vmatpush1.bf16.msra.mxu0 %v143
    %236 = vmatprep.subr.bf16.mxu0 0
    %237 = vmatpush1.bf16.msra.mxu0 %v142
    %238 = vmatprep.subr.bf16.mxu0 0
    %239 = vmatpush2.bf16.msra.mxu0 0
    %240 = vmatprep.subr.bf16.mxu0 0
    %241 = vmatpush2.bf16.msra.mxu0 0
    %242 = vmatprep.subr.bf16.mxu0 0
    %243 = vmatpush2.bf16.msra.mxu0 0
    %244 = vmatprep.subr.bf16.mxu0 0
    %245 = vmatpush2.bf16.msra.mxu0 0
    %246 = vmatprep.subr.bf16.mxu0 0
    %247 = vmatpush2.bf16.msra.mxu0 0
    %248 = vmatprep.subr.bf16.mxu0 0
    %249 = vmatpush2.bf16.msra.mxu0 0
    %250 = vmatprep.subr.bf16.mxu0 0
    %251 = vmatpush2.bf16.msra.mxu0 0
    %252 = vmatprep.subr.bf16.mxu0 0
    %253 = vmatpush2.bf16.msra.mxu0 0
    %254 = vmatprep.mubr.bf16.mxu0 0
    %255 = vmatmul.mubr.bf16.gmra.mxu0 %v220
    %v256 = vpop.f32.mrf.mxu0
    %v257 = vadd.f32 0.0, %v256
    %v258 = vpop.f32.mrf.mxu0
    %v259 = vpop.f32.mrf.mxu0
    %v260 = vpop.f32.mrf.mxu0
    %261 = vdwg.mxu0
    %v262 = vadd.f32 %v103, %v257
    %v263 = vxor.u32 %v262, 2147483648
    %v264 = vmul.f32 %v263, 1.442695
    %v265 = vpow.pop %v264
    %v266 = vadd.f32 %v265, 1.0
    %v267 = vrcp.pop %v266
    %v268 = vmul.f32 1.0, %v267
    %v269 = vtanh.pop %v262
    %v270 = vmul.f32 %v268, %v208
    %272 = vrot.lane.b32.xlu0 %v269, 64
    %v273 = vpop.permute.xlu0 %272
    %v275 = vmul.f32 %v268, %v273
    %277 = vrot.lane.b32.xlu0 %v275, 32
    %v278 = vpop.permute.xlu0 %277
    %v280 = vadd.f32 %v270, %v278
    %v281 = vtanh.pop %v280
    %283 = vrot.lane.b32.xlu0 %v281, 64
    %v284 = vpop.permute.xlu0 %283
    %v286 = vmul.f32 %v268, %v284
    %v287 = vpack.c.bf16 %v286, %v286
    %289 = vrot.lane.b32.xlu0 %v287, 32
    %v290 = vpop.permute.xlu0 %289
    %v292 = vsel %vm146, %v290, 0
    %294 = vmatprep.subr.bf16.mxu0 0
    %295 = vmatpush1.bf16.msra.mxu0 0
    %296 = vmatprep.subr.bf16.mxu0 0
    %297 = vmatpush1.bf16.msra.mxu0 0
    %298 = vmatprep.subr.bf16.mxu0 0
    %299 = vmatpush1.bf16.msra.mxu0 0
    %300 = vmatprep.subr.bf16.mxu0 0
    %301 = vmatpush1.bf16.msra.mxu0 0
    %302 = vmatprep.subr.bf16.mxu0 0
    %303 = vmatpush1.bf16.msra.mxu0 0
    %304 = vmatprep.subr.bf16.mxu0 0
    %305 = vmatpush1.bf16.msra.mxu0 0
    %306 = vmatprep.subr.bf16.mxu0 0
    %307 = vmatpush1.bf16.msra.mxu0 %v143
    %308 = vmatprep.subr.bf16.mxu0 0
    %309 = vmatpush1.bf16.msra.mxu0 %v142
    %310 = vmatprep.subr.bf16.mxu0 0
    %311 = vmatpush2.bf16.msra.mxu0 0
    %312 = vmatprep.subr.bf16.mxu0 0
    %313 = vmatpush2.bf16.msra.mxu0 0
    %314 = vmatprep.subr.bf16.mxu0 0
    %315 = vmatpush2.bf16.msra.mxu0 0
    %316 = vmatprep.subr.bf16.mxu0 0
    %317 = vmatpush2.bf16.msra.mxu0 0
    %318 = vmatprep.subr.bf16.mxu0 0
    %319 = vmatpush2.bf16.msra.mxu0 0
    %320 = vmatprep.subr.bf16.mxu0 0
    %321 = vmatpush2.bf16.msra.mxu0 0
    %322 = vmatprep.subr.bf16.mxu0 0
    %323 = vmatpush2.bf16.msra.mxu0 0
    %324 = vmatprep.subr.bf16.mxu0 0
    %325 = vmatpush2.bf16.msra.mxu0 0
    %326 = vmatprep.mubr.bf16.mxu0 0
    %327 = vmatmul.mubr.bf16.gmra.mxu0 %v292
    %v328 = vpop.f32.mrf.mxu0
    %v329 = vadd.f32 0.0, %v328
    %v330 = vpop.f32.mrf.mxu0
    %v331 = vpop.f32.mrf.mxu0
    %v332 = vpop.f32.mrf.mxu0
    %333 = vdwg.mxu0
    %v334 = vadd.f32 %v102, %v329
    %v335 = vxor.u32 %v334, 2147483648
    %v336 = vmul.f32 %v335, 1.442695
    %v337 = vpow.pop %v336
    %v338 = vadd.f32 %v337, 1.0
    %v339 = vrcp.pop %v338
    %v340 = vmul.f32 1.0, %v339
    %v341 = vtanh.pop %v334
    %v342 = vmul.f32 %v340, %v280
    %344 = vrot.lane.b32.xlu0 %v341, 64
    %v345 = vpop.permute.xlu0 %344
    %v347 = vmul.f32 %v340, %v345
    %349 = vrot.lane.b32.xlu0 %v347, 32
    %v350 = vpop.permute.xlu0 %349
    %v352 = vadd.f32 %v342, %v350
    %v353 = vtanh.pop %v352
    %355 = vrot.lane.b32.xlu0 %v353, 64
    %v356 = vpop.permute.xlu0 %355
    %v358 = vmul.f32 %v340, %v356
    %v359 = vpack.c.bf16 %v358, %v358
    %361 = vrot.lane.b32.xlu0 %v359, 32
    %v362 = vpop.permute.xlu0 %361
    %v364 = vsel %vm146, %v362, 0
    %366 = vmatprep.subr.bf16.mxu0 0
    %367 = vmatpush1.bf16.msra.mxu0 0
    %368 = vmatprep.subr.bf16.mxu0 0
    %369 = vmatpush1.bf16.msra.mxu0 0
    %370 = vmatprep.subr.bf16.mxu0 0
    %371 = vmatpush1.bf16.msra.mxu0 0
    %372 = vmatprep.subr.bf16.mxu0 0
    %373 = vmatpush1.bf16.msra.mxu0 0
    %374 = vmatprep.subr.bf16.mxu0 0
    %375 = vmatpush1.bf16.msra.mxu0 0
    %376 = vmatprep.subr.bf16.mxu0 0
    %377 = vmatpush1.bf16.msra.mxu0 0
    %378 = vmatprep.subr.bf16.mxu0 0
    %379 = vmatpush1.bf16.msra.mxu0 %v143
    %380 = vmatprep.subr.bf16.mxu0 0
    %381 = vmatpush1.bf16.msra.mxu0 %v142
    %382 = vmatprep.subr.bf16.mxu0 0
    %383 = vmatpush2.bf16.msra.mxu0 0
    %384 = vmatprep.subr.bf16.mxu0 0
    %385 = vmatpush2.bf16.msra.mxu0 0
    %386 = vmatprep.subr.bf16.mxu0 0
    %387 = vmatpush2.bf16.msra.mxu0 0
    %388 = vmatprep.subr.bf16.mxu0 0
    %389 = vmatpush2.bf16.msra.mxu0 0
    %390 = vmatprep.subr.bf16.mxu0 0
    %391 = vmatpush2.bf16.msra.mxu0 0
    %392 = vmatprep.subr.bf16.mxu0 0
    %393 = vmatpush2.bf16.msra.mxu0 0
    %394 = vmatprep.subr.bf16.mxu0 0
    %395 = vmatpush2.bf16.msra.mxu0 0
    %396 = vmatprep.subr.bf16.mxu0 0
    %397 = vmatpush2.bf16.msra.mxu0 0
    %398 = vmatprep.mubr.bf16.mxu0 0
    %399 = vmatmul.mubr.bf16.gmra.mxu0 %v364
    %v400 = vpop.f32.mrf.mxu0
    %v401 = vadd.f32 0.0, %v400
    %v402 = vpop.f32.mrf.mxu0
    %v403 = vpop.f32.mrf.mxu0
    %v404 = vpop.f32.mrf.mxu0
    %405 = vdwg.mxu0
    %v406 = vadd.f32 %v104, %v401
    %v407 = vxor.u32 %v406, 2147483648
    %v408 = vmul.f32 %v407, 1.442695
    %v409 = vpow.pop %v408
    %v410 = vadd.f32 %v409, 1.0
    %v411 = vrcp.pop %v410
    %v412 = vmul.f32 1.0, %v411
    %v413 = vtanh.pop %v406
    %v414 = vmul.f32 %v412, %v352
    %416 = vrot.lane.b32.xlu0 %v413, 64
    %v417 = vpop.permute.xlu0 %416
    %v419 = vmul.f32 %v412, %v417
    %421 = vrot.lane.b32.xlu0 %v419, 32
    %v422 = vpop.permute.xlu0 %421
    %v424 = vadd.f32 %v414, %v422
    %v425 = vtanh.pop %v424
    %427 = vrot.lane.b32.xlu0 %v425, 64
    %v428 = vpop.permute.xlu0 %427
    %v430 = vmul.f32 %v412, %v428
    %v431 = vpack.c.bf16 %v430, %v430
    %433 = vrot.lane.b32.xlu0 %v431, 32
    %v434 = vpop.permute.xlu0 %433
    %v436 = vsel %vm146, %v434, 0
    %438 = vmatprep.subr.bf16.mxu0 0
    %439 = vmatpush1.bf16.msra.mxu0 0
    %440 = vmatprep.subr.bf16.mxu0 0
    %441 = vmatpush1.bf16.msra.mxu0 0
    %442 = vmatprep.subr.bf16.mxu0 0
    %443 = vmatpush1.bf16.msra.mxu0 0
    %444 = vmatprep.subr.bf16.mxu0 0
    %445 = vmatpush1.bf16.msra.mxu0 0
    %446 = vmatprep.subr.bf16.mxu0 0
    %447 = vmatpush1.bf16.msra.mxu0 0
    %448 = vmatprep.subr.bf16.mxu0 0
    %449 = vmatpush1.bf16.msra.mxu0 0
    %450 = vmatprep.subr.bf16.mxu0 0
    %451 = vmatpush1.bf16.msra.mxu0 %v143
    %452 = vmatprep.subr.bf16.mxu0 0
    %453 = vmatpush1.bf16.msra.mxu0 %v142
    %454 = vmatprep.subr.bf16.mxu0 0
    %455 = vmatpush2.bf16.msra.mxu0 0
    %456 = vmatprep.subr.bf16.mxu0 0
    %457 = vmatpush2.bf16.msra.mxu0 0
    %458 = vmatprep.subr.bf16.mxu0 0
    %459 = vmatpush2.bf16.msra.mxu0 0
    %460 = vmatprep.subr.bf16.mxu0 0
    %461 = vmatpush2.bf16.msra.mxu0 0
    %462 = vmatprep.subr.bf16.mxu0 0
    %463 = vmatpush2.bf16.msra.mxu0 0
    %464 = vmatprep.subr.bf16.mxu0 0
    %465 = vmatpush2.bf16.msra.mxu0 0
    %466 = vmatprep.subr.bf16.mxu0 0
    %467 = vmatpush2.bf16.msra.mxu0 0
    %468 = vmatprep.subr.bf16.mxu0 0
    %469 = vmatpush2.bf16.msra.mxu0 0
    %470 = vmatprep.mubr.bf16.mxu0 0
    %471 = vmatmul.mubr.bf16.gmra.mxu0 %v436
    %v472 = vpop.f32.mrf.mxu0
    %v473 = vadd.f32 0.0, %v472
    %v474 = vpop.f32.mrf.mxu0
    %v475 = vpop.f32.mrf.mxu0
    %v476 = vpop.f32.mrf.mxu0
    %477 = vdwg.mxu0
    %v478 = vadd.f32 %v112, %v473
    %v479 = vxor.u32 %v478, 2147483648
    %v480 = vmul.f32 %v479, 1.442695
    %v481 = vpow.pop %v480
    %v482 = vadd.f32 %v481, 1.0
    %v483 = vrcp.pop %v482
    %v484 = vmul.f32 1.0, %v483
    %v485 = vtanh.pop %v478
    %v486 = vmul.f32 %v484, %v424
    %488 = vrot.lane.b32.xlu0 %v485, 64
    %v489 = vpop.permute.xlu0 %488
    %v491 = vmul.f32 %v484, %v489
    %493 = vrot.lane.b32.xlu0 %v491, 32
    %v494 = vpop.permute.xlu0 %493
    %v496 = vadd.f32 %v486, %v494
    %v497 = vtanh.pop %v496
    %499 = vrot.lane.b32.xlu0 %v497, 64
    %v500 = vpop.permute.xlu0 %499
    %v502 = vmul.f32 %v484, %v500
    %v503 = vpack.c.bf16 %v502, %v502
    %505 = vrot.lane.b32.xlu0 %v503, 32
    %v506 = vpop.permute.xlu0 %505
    %v508 = vsel %vm146, %v506, 0
    %510 = vmatprep.subr.bf16.mxu0 0
    %511 = vmatpush1.bf16.msra.mxu0 0
    %512 = vmatprep.subr.bf16.mxu0 0
    %513 = vmatpush1.bf16.msra.mxu0 0
    %514 = vmatprep.subr.bf16.mxu0 0
    %515 = vmatpush1.bf16.msra.mxu0 0
    %516 = vmatprep.subr.bf16.mxu0 0
    %517 = vmatpush1.bf16.msra.mxu0 0
    %518 = vmatprep.subr.bf16.mxu0 0
    %519 = vmatpush1.bf16.msra.mxu0 0
    %520 = vmatprep.subr.bf16.mxu0 0
    %521 = vmatpush1.bf16.msra.mxu0 0
    %522 = vmatprep.subr.bf16.mxu0 0
    %523 = vmatpush1.bf16.msra.mxu0 %v143
    %524 = vmatprep.subr.bf16.mxu0 0
    %525 = vmatpush1.bf16.msra.mxu0 %v142
    %526 = vmatprep.subr.bf16.mxu0 0
    %527 = vmatpush2.bf16.msra.mxu0 0
    %528 = vmatprep.subr.bf16.mxu0 0
    %529 = vmatpush2.bf16.msra.mxu0 0
    %530 = vmatprep.subr.bf16.mxu0 0
    %531 = vmatpush2.bf16.msra.mxu0 0
    %532 = vmatprep.subr.bf16.mxu0 0
    %533 = vmatpush2.bf16.msra.mxu0 0
    %534 = vmatprep.subr.bf16.mxu0 0
    %535 = vmatpush2.bf16.msra.mxu0 0
    %536 = vmatprep.subr.bf16.mxu0 0
    %537 = vmatpush2.bf16.msra.mxu0 0
    %538 = vmatprep.subr.bf16.mxu0 0
    %539 = vmatpush2.bf16.msra.mxu0 0
    %540 = vmatprep.subr.bf16.mxu0 0
    %541 = vmatpush2.bf16.msra.mxu0 0
    %542 = vmatprep.mubr.bf16.mxu0 0
    %543 = vmatmul.mubr.bf16.gmra.mxu0 %v508
    %v544 = vpop.f32.mrf.mxu0
    %v545 = vadd.f32 0.0, %v544
    %v546 = vpop.f32.mrf.mxu0
    %v547 = vpop.f32.mrf.mxu0
    %v548 = vpop.f32.mrf.mxu0
    %549 = vdwg.mxu0
    %v550 = vadd.f32 %v120, %v545
    %v551 = vxor.u32 %v550, 2147483648
    %v552 = vmul.f32 %v551, 1.442695
    %v553 = vpow.pop %v552
    %v554 = vadd.f32 %v553, 1.0
    %v555 = vrcp.pop %v554
    %v556 = vmul.f32 1.0, %v555
    %v557 = vtanh.pop %v550
    %v558 = vmul.f32 %v556, %v496
    %560 = vrot.lane.b32.xlu0 %v557, 64
    %v561 = vpop.permute.xlu0 %560
    %v563 = vmul.f32 %v556, %v561
    %565 = vrot.lane.b32.xlu0 %v563, 32
    %v566 = vpop.permute.xlu0 %565
    %v568 = vadd.f32 %v558, %v566
    %v569 = vtanh.pop %v568
    %571 = vrot.lane.b32.xlu0 %v569, 64
    %v572 = vpop.permute.xlu0 %571
    %v574 = vmul.f32 %v556, %v572
    %v575 = vpack.c.bf16 %v574, %v574
    %577 = vrot.lane.b32.xlu0 %v575, 32
    %v578 = vpop.permute.xlu0 %577
    %v580 = vsel %vm146, %v578, 0
    %582 = vmatprep.subr.bf16.mxu0 0
    %583 = vmatpush1.bf16.msra.mxu0 0
    %584 = vmatprep.subr.bf16.mxu0 0
    %585 = vmatpush1.bf16.msra.mxu0 0
    %586 = vmatprep.subr.bf16.mxu0 0
    %587 = vmatpush1.bf16.msra.mxu0 0
    %588 = vmatprep.subr.bf16.mxu0 0
    %589 = vmatpush1.bf16.msra.mxu0 0
    %590 = vmatprep.subr.bf16.mxu0 0
    %591 = vmatpush1.bf16.msra.mxu0 0
    %592 = vmatprep.subr.bf16.mxu0 0
    %593 = vmatpush1.bf16.msra.mxu0 0
    %594 = vmatprep.subr.bf16.mxu0 0
    %595 = vmatpush1.bf16.msra.mxu0 %v143
    %596 = vmatprep.subr.bf16.mxu0 0
    %597 = vmatpush1.bf16.msra.mxu0 %v142
    %598 = vmatprep.subr.bf16.mxu0 0
    %599 = vmatpush2.bf16.msra.mxu0 0
    %600 = vmatprep.subr.bf16.mxu0 0
    %601 = vmatpush2.bf16.msra.mxu0 0
    %602 = vmatprep.subr.bf16.mxu0 0
    %603 = vmatpush2.bf16.msra.mxu0 0
    %604 = vmatprep.subr.bf16.mxu0 0
    %605 = vmatpush2.bf16.msra.mxu0 0
    %606 = vmatprep.subr.bf16.mxu0 0
    %607 = vmatpush2.bf16.msra.mxu0 0
    %608 = vmatprep.subr.bf16.mxu0 0
    %609 = vmatpush2.bf16.msra.mxu0 0
    %610 = vmatprep.subr.bf16.mxu0 0
    %611 = vmatpush2.bf16.msra.mxu0 0
    %612 = vmatprep.subr.bf16.mxu0 0
    %613 = vmatpush2.bf16.msra.mxu0 0
    %614 = vmatprep.mubr.bf16.mxu0 0
    %615 = vmatmul.mubr.bf16.gmra.mxu0 %v580
    %v616 = vpop.f32.mrf.mxu0
    %v617 = vadd.f32 0.0, %v616
    %v618 = vpop.f32.mrf.mxu0
    %v619 = vpop.f32.mrf.mxu0
    %v620 = vpop.f32.mrf.mxu0
    %621 = vdwg.mxu0
    %v622 = vadd.f32 %v119, %v617
    %v623 = vxor.u32 %v622, 2147483648
    %v624 = vmul.f32 %v623, 1.442695
    %v625 = vpow.pop %v624
    %v626 = vadd.f32 %v625, 1.0
    %v627 = vrcp.pop %v626
    %v628 = vmul.f32 1.0, %v627
    %v629 = vtanh.pop %v622
    %v630 = vmul.f32 %v628, %v568
    %632 = vrot.lane.b32.xlu0 %v629, 64
    %v633 = vpop.permute.xlu0 %632
    %v635 = vmul.f32 %v628, %v633
    %637 = vrot.lane.b32.xlu0 %v635, 32
    %v638 = vpop.permute.xlu0 %637
    %v640 = vadd.f32 %v630, %v638
    %v641 = vtanh.pop %v640
    %643 = vrot.lane.b32.xlu0 %v641, 64
    %v644 = vpop.permute.xlu0 %643
    %v646 = vmul.f32 %v628, %v644
    %v647 = vpack.c.bf16 %v646, %v646
    %649 = vrot.lane.b32.xlu0 %v647, 32
    %v650 = vpop.permute.xlu0 %649
    %v652 = vsel %vm146, %v650, 0
    %654 = vmatprep.subr.bf16.mxu0 0
    %655 = vmatpush1.bf16.msra.mxu0 0
    %656 = vmatprep.subr.bf16.mxu0 0
    %657 = vmatpush1.bf16.msra.mxu0 0
    %658 = vmatprep.subr.bf16.mxu0 0
    %659 = vmatpush1.bf16.msra.mxu0 0
    %660 = vmatprep.subr.bf16.mxu0 0
    %661 = vmatpush1.bf16.msra.mxu0 0
    %662 = vmatprep.subr.bf16.mxu0 0
    %663 = vmatpush1.bf16.msra.mxu0 0
    %664 = vmatprep.subr.bf16.mxu0 0
    %665 = vmatpush1.bf16.msra.mxu0 0
    %666 = vmatprep.subr.bf16.mxu0 0
    %667 = vmatpush1.bf16.msra.mxu0 %v143
    %668 = vmatprep.subr.bf16.mxu0 0
    %669 = vmatpush1.bf16.msra.mxu0 %v142
    %670 = vmatprep.subr.bf16.mxu0 0
    %671 = vmatpush2.bf16.msra.mxu0 0
    %672 = vmatprep.subr.bf16.mxu0 0
    %673 = vmatpush2.bf16.msra.mxu0 0
    %674 = vmatprep.subr.bf16.mxu0 0
    %675 = vmatpush2.bf16.msra.mxu0 0
    %676 = vmatprep.subr.bf16.mxu0 0
    %677 = vmatpush2.bf16.msra.mxu0 0
    %678 = vmatprep.subr.bf16.mxu0 0
    %679 = vmatpush2.bf16.msra.mxu0 0
    %680 = vmatprep.subr.bf16.mxu0 0
    %681 = vmatpush2.bf16.msra.mxu0 0
    %682 = vmatprep.subr.bf16.mxu0 0
    %683 = vmatpush2.bf16.msra.mxu0 0
    %684 = vmatprep.subr.bf16.mxu0 0
    %685 = vmatpush2.bf16.msra.mxu0 0
    %686 = vmatprep.mubr.bf16.mxu0 0
    %687 = vmatmul.mubr.bf16.gmra.mxu0 %v652
    %v688 = vpop.f32.mrf.mxu0
    %v689 = vadd.f32 0.0, %v688
    %v690 = vpop.f32.mrf.mxu0
    %v691 = vpop.f32.mrf.mxu0
    %v692 = vpop.f32.mrf.mxu0
    %693 = vdwg.mxu0
    %v694 = vadd.f32 %v121, %v689
    %v695 = vxor.u32 %v694, 2147483648
    %v696 = vmul.f32 %v695, 1.442695
    %v697 = vpow.pop %v696
    %v698 = vadd.f32 %v697, 1.0
    %v699 = vrcp.pop %v698
    %v700 = vmul.f32 1.0, %v699
    %v701 = vtanh.pop %v694
    %v702 = vmul.f32 %v700, %v640
    %704 = vrot.lane.b32.xlu0 %v701, 64
    %v705 = vpop.permute.xlu0 %704
    %v707 = vmul.f32 %v700, %v705
    %709 = vrot.lane.b32.xlu0 %v707, 32
    %v710 = vpop.permute.xlu0 %709
    %v712 = vadd.f32 %v702, %v710
    %v713 = vtanh.pop %v712
    %715 = vrot.lane.b32.xlu0 %v713, 64
    %v716 = vpop.permute.xlu0 %715
    %v718 = vmul.f32 %v700, %v716
    %v721 = vunpack.c.l.s4 1983009808
    %v722 = vunpack.c.0.s8 %v721
    %v723 = vlaneseq
    %v724 = vshrl.u32 %v723, 7
    %v725 = vsub.s32 %v722, %v724
    %v726 = vrot.slane %v718, %v725
    %727 = vrot.lane.b32.xlu0 %v726, 32
    %v728 = vpop.permute.xlu0 %727
    %vm730 = vcmask 254976
    %731 = vst.msk [vmem:[#allocation2] sm:$0x3] %vm730, %v728
    // Predicated region
    $region18: #{encoder_forward.1} parent=1 // pred_check
      _
    $region19: #{encoder_forward.1} parent=1 // pred_check_branch
      %733 = sbr.rel (0) target = $region21
    $region20: #{encoder_forward.1} parent=1 // pred_region
      %s735 = ssub.s32 32, 32
      %736 = vsyncadd [#allocation3], %s735
      %s738 = sshll.u32 [#allocation2], 4
      %s739 = int_to_ptr.vmem [resolvable:$true] %s738
      %741 = dma.vmem_to_hbm [thread:$0]  %s739, 32, %s4, [#allocation3]
    $region21: #{encoder_forward.1} parent=1 // pred_fallthru
      _
    // Predicated region
    $region22: #{encoder_forward.1} parent=1 // pred_check
      _
    $region23: #{encoder_forward.1} parent=1 // pred_check_branch
      %743 = sbr.rel (0) target = $region25
    $region24: #{encoder_forward.1} parent=1 // pred_region
      %744 = dma.done [#allocation3], 32
    $region25: #{encoder_forward.1} parent=1 // pred_fallthru
      _
    %745 = vsyncpa [#allocation3], 1

</llo_original>
